<compile_context>
chip_gen: v7x
topology: tpu7x:2x2x1
jax: 0.10.0
libtpu: 0.0.40
codegen_flags: <defaults>
</compile_context>

<pallas_src>
import functools

import jax
import jax.numpy as jnp
from jax.experimental import pallas as pl
from jax.experimental.pallas import tpu as pltpu

KH = KW = 3
CO_PAD = 128       # padded conv output channels (lane-dense)
NCLS_PAD = 128     # padded classifier outputs (lane-dense)
M_CHUNK = 128      # spatial rows per fused conv->relu->pool chunk


def _round_up(x, m):
    return (x + m - 1) // m * m


def _pick_batch_block(n):
    """Images per grid step.

    Pack several images per step to amortize per-step overhead, but keep the
    grid length >= 2 when possible so v7x can shard steps across its two
    TensorCores.  VMEM is not a constraint at these sizes.
    """
    if n <= 2:
        return n
    return min(8, max(1, n // 2))


# ---------------------------------------------------------------------------
# Pallas kernel: fused conv-as-single-matmul -> bias -> ReLU -> masked mean
#                pool (chunked over spatial rows) -> f32 linear head.
# ---------------------------------------------------------------------------
def _dummy_model_kernel(x_ref, w1_ref, b1_ref, mask_ref, w2_ref, b2_ref,
                        out_ref, *, mc):
    # x_ref:    [B, HW_pad, C*9]     bf16  im2col patches (zero rows past H*W)
    # w1_ref:   [C*9, CO_PAD]        bf16  conv weight (out-channels zero-padded)
    # b1_ref:   [1, CO_PAD]          f32
    # mask_ref: [HW_pad, 1]          f32   1/(H*W) on valid rows, 0 on pad rows
    # w2_ref:   [CO_PAD, NCLS_PAD]   f32   fc weight (rows/cols zero-padded)
    # b2_ref:   [1, NCLS_PAD]        f32
    # out_ref:  [1, B, NCLS_PAD]     f32
    bsz, hw_pad, _ = x_ref.shape
    n_chunks = hw_pad // mc

    w1 = w1_ref[...]                       # hoisted, grid-invariant in VMEM
    b1 = b1_ref[...]

    pooled_rows = []
    for b in range(bsz):                   # static: B images stacked per step
        acc = jnp.zeros((1, CO_PAD), jnp.float32)
        for j in range(n_chunks):          # static, aligned 128-row chunks
            lo, hi = j * mc, (j + 1) * mc
            xc = x_ref[b, lo:hi, :]        # [mc, 36] bf16 (single cast in wrapper)
            # One K=36 MXU push per chunk (f32 accumulation).
            s = jnp.dot(xc, w1, preferred_element_type=jnp.float32)   # [mc, 128]
            h = jnp.maximum(s + b1, 0.0)                              # bias+ReLU, f32
            # Masked partial mean-pool: 1/(H*W) folded into the mask, pad rows = 0.
            acc = acc + jnp.sum(h * mask_ref[lo:hi, :], axis=0, keepdims=True)
        pooled_rows.append(acc)            # [1, CO_PAD] f32

    pooled = jnp.concatenate(pooled_rows, axis=0)                     # [B, 128] f32
    # Classifier head kept fully in f32 (negligible FLOPs, avoids bf16 loss).
    logits = jnp.dot(pooled, w2_ref[...],
                     preferred_element_type=jnp.float32) + b2_ref[...]
    out_ref[0] = logits.astype(out_ref.dtype)


# ---------------------------------------------------------------------------
# Wrapper: layout plumbing (im2col, padding, dtype) + pallas_call.
# ---------------------------------------------------------------------------
def dummy_model_forward(x, params):
    """Equivalent of DummyModel(model).forward(x) with the synthetic inner model."""
    w_conv, b_conv, w_fc, b_fc = params
    n, c, hh, ww = x.shape
    c_out = w_conv.shape[0]
    n_cls = w_fc.shape[0]

    hw = hh * ww
    hw_pad = _round_up(hw, M_CHUNK)
    k_in = c * KH * KW

    bblk = _pick_batch_block(n)            # images per grid step
    n_pad = _round_up(n, bblk)
    nb = n_pad // bblk                     # grid length

    # Input slab: im2col patches [N_pad, HW_pad, C*9], bf16 (single cast here;
    # halves the only per-step HBM->VMEM DMA).
    x_f32 = jnp.pad(x.astype(jnp.float32), ((0, n_pad - n), (0, 0), (0, 0), (0, 0)))
    patches = _im2col_nchw(x_f32, KH, KW)                              # [N_pad, HW, 36]
    patches = jnp.pad(patches, ((0, 0), (0, hw_pad - hw), (0, 0)))
    patches = patches.astype(jnp.bfloat16)

    # Conv weight as a single [C*9, CO_PAD] bf16 RHS (one K=36 matmul).
    w1 = jnp.pad(w_conv.astype(jnp.float32).reshape(c_out, k_in).T,
                 ((0, 0), (0, CO_PAD - c_out))).astype(jnp.bfloat16)
    b1 = jnp.pad(b_conv.astype(jnp.float32), (0, CO_PAD - c_out)).reshape(1, CO_PAD)

    # Mean-pool mask: 1/(H*W) on the hw valid rows, 0 on the pad rows.
    mask = jnp.pad(jnp.full((hw, 1), 1.0 / float(hw), jnp.float32),
                   ((0, hw_pad - hw), (0, 0)))                          # [HW_pad, 1]

    # Classifier weights stay f32 (precision; negligible cost).
    w2 = jnp.pad(w_fc.T.astype(jnp.float32),
                 ((0, CO_PAD - c_out), (0, NCLS_PAD - n_cls)))          # [128, 128]
    b2 = jnp.pad(b_fc.astype(jnp.float32), (0, NCLS_PAD - n_cls)).reshape(1, NCLS_PAD)

    kernel = functools.partial(_dummy_model_kernel, mc=M_CHUNK)

    out = pl.pallas_call(
        kernel,
        out_shape=jax.ShapeDtypeStruct((nb, bblk, NCLS_PAD), jnp.float32),
        grid_spec=pltpu.PrefetchScalarGridSpec(
            num_scalar_prefetch=0,
            grid=(nb,),
            in_specs=[
                pl.BlockSpec((bblk, hw_pad, k_in), lambda g: (g, 0, 0)),   # im2col x
                pl.BlockSpec((k_in, CO_PAD), lambda g: (0, 0)),            # conv weight
                pl.BlockSpec((1, CO_PAD), lambda g: (0, 0)),               # conv bias
                pl.BlockSpec((hw_pad, 1), lambda g: (0, 0)),               # pool mask
                pl.BlockSpec((CO_PAD, NCLS_PAD), lambda g: (0, 0)),        # fc weight
                pl.BlockSpec((1, NCLS_PAD), lambda g: (0, 0)),             # fc bias
            ],
            out_specs=pl.BlockSpec((1, bblk, NCLS_PAD), lambda g: (g, 0, 0)),
        ),
        compiler_params=pltpu.CompilerParams(
            dimension_semantics=("parallel",)),
    )(patches, w1, b1, mask, w2, b2)

    return out.reshape(n_pad, NCLS_PAD)[:n, :n_cls]


# ---------------------------------------------------------------------------
# Plain-JAX f32 reference (same math, no Pallas) for a sanity check.
# ---------------------------------------------------------------------------
def _im2col_nchw(x, kh=3, kw=3):
    n, c, h, w = x.shape
    xp = jnp.pad(x, ((0, 0), (0, 0), (kh // 2, kh // 2), (kw // 2, kw // 2)))
    cols = []
    for ki in range(kh):
        for kj in range(kw):
            cols.append(xp[:, :, ki:ki + h, kj:kj + w])
    patches = jnp.stack(cols, axis=0)                       # [9, N, C, H, W]
    patches = jnp.transpose(patches, (1, 3, 4, 2, 0))       # [N, H, W, C, 9]
    return patches.reshape(n, h * w, c * kh * kw)


def _reference_forward(x, params):
    w_conv, b_conv, w_fc, b_fc = params
    n, c, h, w = x.shape
    c_out = w_conv.shape[0]
    patches = _im2col_nchw(x.astype(jnp.float32), 3, 3)
    w1 = w_conv.reshape(c_out, c * 9).T
    hidden = jnp.maximum(patches @ w1 + b_conv[None, None, :], 0.0)
    pooled = jnp.mean(hidden, axis=1)
    return pooled @ w_fc.T + b_fc[None, :]


if __name__ == "__main__":
    key = jax.random.PRNGKey(0)
    k_x, k_wc, k_bc, k_wf, k_bf = jax.random.split(key, 5)

    N, C, H, W = 2, 4, 16, 16
    C_OUT, N_CLS = 8, 10

    x = jax.random.normal(k_x, (N, C, H, W), dtype=jnp.float32)

    # Deterministic synthetic parameters (PyTorch conv weight layout [out,in,kh,kw]).
    w_conv = 0.1 * jax.random.normal(k_wc, (C_OUT, C, 3, 3), dtype=jnp.float32)
    b_conv = 0.1 * jax.random.normal(k_bc, (C_OUT,), dtype=jnp.float32)
    w_fc = 0.1 * jax.random.normal(k_wf, (N_CLS, C_OUT), dtype=jnp.float32)
    b_fc = 0.1 * jax.random.normal(k_bf, (N_CLS,), dtype=jnp.float32)
    params = (w_conv, b_conv, w_fc, b_fc)

    out = jax.block_until_ready(dummy_model_forward(x, params))
    ref = _reference_forward(x, params)

    assert out.shape == (N, N_CLS)
    # Conv operands are bf16 (f32 MXU accumulation); the FC head is full f32,
    # so observed error is O(1e-3).  Tolerance kept loose for safety.
    assert jnp.allclose(out, ref, atol=2e-2, rtol=2e-2), (
        float(jnp.max(jnp.abs(out - ref))))

    # TODO(synk): forward_IN (ImageNet-normalization path of the wrapped model)
    # is not implemented since the wrapped model is abstract in DummyModel.
    print("KERNEL_OK")
</pallas_src>

<mosaic_0001>
module attributes {stable_mosaic.version = 11 : i64} {
  func.func @_dummy_model_kernel(%arg0: i32, %arg1: memref<2x256x36xbf16, #tpu.memory_space<vmem>>, %arg2: memref<36x128xbf16, #tpu.memory_space<vmem>>, %arg3: memref<1x128xf32, #tpu.memory_space<vmem>>, %arg4: memref<256x1xf32, #tpu.memory_space<vmem>>, %arg5: memref<128x128xf32, #tpu.memory_space<vmem>>, %arg6: memref<1x128xf32, #tpu.memory_space<vmem>>, %arg7: memref<1x2x128xf32, #tpu.memory_space<vmem>>) attributes {dimension_semantics = [#tpu.dimension_semantics<parallel>], iteration_bounds = array<i64: 1>, scalar_prefetch = 0 : i64, scratch_operands = 0 : i64, tpu.core_type = #tpu.core_type<tc>, window_params = [{transform_indices = @transform_0, window_bounds = array<i64: 2, 256, 36>}, {pipeline_mode = #tpu.pipeline_mode<synchronous>, transform_indices = @transform_1, window_bounds = array<i64: 36, 128>}, {pipeline_mode = #tpu.pipeline_mode<synchronous>, transform_indices = @transform_2, window_bounds = array<i64: 1, 128>}, {pipeline_mode = #tpu.pipeline_mode<synchronous>, transform_indices = @transform_3, window_bounds = array<i64: 256, 1>}, {pipeline_mode = #tpu.pipeline_mode<synchronous>, transform_indices = @transform_4, window_bounds = array<i64: 128, 128>}, {pipeline_mode = #tpu.pipeline_mode<synchronous>, transform_indices = @transform_5, window_bounds = array<i64: 1, 128>}, {transform_indices = @transform_6, window_bounds = array<i64: 1, 2, 128>}]} {
    %c0 = arith.constant 0 : index
    %c0_0 = arith.constant 0 : index
    %0 = vector.load %arg2[%c0, %c0_0] : memref<36x128xbf16, #tpu.memory_space<vmem>>, vector<36x128xbf16>
    %c0_1 = arith.constant 0 : index
    %c0_2 = arith.constant 0 : index
    %1 = vector.load %arg3[%c0_1, %c0_2] : memref<1x128xf32, #tpu.memory_space<vmem>>, vector<1x128xf32>
    %cst = arith.constant 0.000000e+00 : f32
    %2 = vector.broadcast %cst : f32 to vector<1x128xf32>
    %c0_3 = arith.constant 0 : index
    %c0_4 = arith.constant 0 : index
    %c0_5 = arith.constant 0 : index
    %3 = vector.load %arg1[%c0_3, %c0_4, %c0_5] : memref<2x256x36xbf16, #tpu.memory_space<vmem>>, vector<1x128x36xbf16>
    %4 = vector.shape_cast %3 : vector<1x128x36xbf16> to vector<128x36xbf16>
    %cst_6 = arith.constant dense<0.000000e+00> : vector<128x128xf32>
    %5 = tpu.matmul %4, %0, %cst_6 {dimension_numbers = #tpu.dot_dimension_numbers<[1], [0], [0], [1], [0, 0, 1, 1], [], []>} : vector<128x36xbf16>, vector<36x128xbf16>, vector<128x128xf32> -> vector<128x128xf32>
    %6 = vector.broadcast %1 : vector<1x128xf32> to vector<128x128xf32>
    %7 = arith.addf %5, %6 : vector<128x128xf32>
    %cst_7 = arith.constant 0.000000e+00 : f32
    %8 = vector.broadcast %cst_7 : f32 to vector<128x128xf32>
    %9 = arith.maximumf %7, %8 : vector<128x128xf32>
    %c0_8 = arith.constant 0 : index
    %c0_9 = arith.constant 0 : index
    %10 = vector.load %arg4[%c0_8, %c0_9] : memref<256x1xf32, #tpu.memory_space<vmem>>, vector<128x1xf32>
    %11 = vector.broadcast %10 : vector<128x1xf32> to vector<128x128xf32>
    %12 = arith.mulf %9, %11 : vector<128x128xf32>
    %cst_10 = arith.constant dense<0.000000e+00> : vector<128xf32>
    %13 = vector.multi_reduction <add>, %12, %cst_10 [0] : vector<128x128xf32> to vector<128xf32>
    %14 = vector.shape_cast %13 : vector<128xf32> to vector<1x128xf32>
    %15 = arith.addf %2, %14 : vector<1x128xf32>
    %c0_11 = arith.constant 0 : index
    %c128 = arith.constant 128 : index
    %c0_12 = arith.constant 0 : index
    %16 = vector.load %arg1[%c0_11, %c128, %c0_12] : memref<2x256x36xbf16, #tpu.memory_space<vmem>>, vector<1x128x36xbf16>
    %17 = vector.shape_cast %16 : vector<1x128x36xbf16> to vector<128x36xbf16>
    %cst_13 = arith.constant dense<0.000000e+00> : vector<128x128xf32>
    %18 = tpu.matmul %17, %0, %cst_13 {dimension_numbers = #tpu.dot_dimension_numbers<[1], [0], [0], [1], [0, 0, 1, 1], [], []>} : vector<128x36xbf16>, vector<36x128xbf16>, vector<128x128xf32> -> vector<128x128xf32>
    %19 = vector.broadcast %1 : vector<1x128xf32> to vector<128x128xf32>
    %20 = arith.addf %18, %19 : vector<128x128xf32>
    %cst_14 = arith.constant 0.000000e+00 : f32
    %21 = vector.broadcast %cst_14 : f32 to vector<128x128xf32>
    %22 = arith.maximumf %20, %21 : vector<128x128xf32>
    %c128_15 = arith.constant 128 : index
    %c0_16 = arith.constant 0 : index
    %23 = vector.load %arg4[%c128_15, %c0_16] : memref<256x1xf32, #tpu.memory_space<vmem>>, vector<128x1xf32>
    %24 = vector.broadcast %23 : vector<128x1xf32> to vector<128x128xf32>
    %25 = arith.mulf %22, %24 : vector<128x128xf32>
    %cst_17 = arith.constant dense<0.000000e+00> : vector<128xf32>
    %26 = vector.multi_reduction <add>, %25, %cst_17 [0] : vector<128x128xf32> to vector<128xf32>
    %27 = vector.shape_cast %26 : vector<128xf32> to vector<1x128xf32>
    %28 = arith.addf %15, %27 : vector<1x128xf32>
    %cst_18 = arith.constant 0.000000e+00 : f32
    %29 = vector.broadcast %cst_18 : f32 to vector<1x128xf32>
    %c1 = arith.constant 1 : index
    %c0_19 = arith.constant 0 : index
    %c0_20 = arith.constant 0 : index
    %30 = vector.load %arg1[%c1, %c0_19, %c0_20] : memref<2x256x36xbf16, #tpu.memory_space<vmem>>, vector<1x128x36xbf16>
    %31 = vector.shape_cast %30 : vector<1x128x36xbf16> to vector<128x36xbf16>
    %cst_21 = arith.constant dense<0.000000e+00> : vector<128x128xf32>
    %32 = tpu.matmul %31, %0, %cst_21 {dimension_numbers = #tpu.dot_dimension_numbers<[1], [0], [0], [1], [0, 0, 1, 1], [], []>} : vector<128x36xbf16>, vector<36x128xbf16>, vector<128x128xf32> -> vector<128x128xf32>
    %33 = vector.broadcast %1 : vector<1x128xf32> to vector<128x128xf32>
    %34 = arith.addf %32, %33 : vector<128x128xf32>
    %cst_22 = arith.constant 0.000000e+00 : f32
    %35 = vector.broadcast %cst_22 : f32 to vector<128x128xf32>
    %36 = arith.maximumf %34, %35 : vector<128x128xf32>
    %c0_23 = arith.constant 0 : index
    %c0_24 = arith.constant 0 : index
    %37 = vector.load %arg4[%c0_23, %c0_24] : memref<256x1xf32, #tpu.memory_space<vmem>>, vector<128x1xf32>
    %38 = vector.broadcast %37 : vector<128x1xf32> to vector<128x128xf32>
    %39 = arith.mulf %36, %38 : vector<128x128xf32>
    %cst_25 = arith.constant dense<0.000000e+00> : vector<128xf32>
    %40 = vector.multi_reduction <add>, %39, %cst_25 [0] : vector<128x128xf32> to vector<128xf32>
    %41 = vector.shape_cast %40 : vector<128xf32> to vector<1x128xf32>
    %42 = arith.addf %29, %41 : vector<1x128xf32>
    %c1_26 = arith.constant 1 : index
    %c128_27 = arith.constant 128 : index
    %c0_28 = arith.constant 0 : index
    %43 = vector.load %arg1[%c1_26, %c128_27, %c0_28] : memref<2x256x36xbf16, #tpu.memory_space<vmem>>, vector<1x128x36xbf16>
    %44 = vector.shape_cast %43 : vector<1x128x36xbf16> to vector<128x36xbf16>
    %cst_29 = arith.constant dense<0.000000e+00> : vector<128x128xf32>
    %45 = tpu.matmul %44, %0, %cst_29 {dimension_numbers = #tpu.dot_dimension_numbers<[1], [0], [0], [1], [0, 0, 1, 1], [], []>} : vector<128x36xbf16>, vector<36x128xbf16>, vector<128x128xf32> -> vector<128x128xf32>
    %46 = vector.broadcast %1 : vector<1x128xf32> to vector<128x128xf32>
    %47 = arith.addf %45, %46 : vector<128x128xf32>
    %cst_30 = arith.constant 0.000000e+00 : f32
    %48 = vector.broadcast %cst_30 : f32 to vector<128x128xf32>
    %49 = arith.maximumf %47, %48 : vector<128x128xf32>
    %c128_31 = arith.constant 128 : index
    %c0_32 = arith.constant 0 : index
    %50 = vector.load %arg4[%c128_31, %c0_32] : memref<256x1xf32, #tpu.memory_space<vmem>>, vector<128x1xf32>
    %51 = vector.broadcast %50 : vector<128x1xf32> to vector<128x128xf32>
    %52 = arith.mulf %49, %51 : vector<128x128xf32>
    %cst_33 = arith.constant dense<0.000000e+00> : vector<128xf32>
    %53 = vector.multi_reduction <add>, %52, %cst_33 [0] : vector<128x128xf32> to vector<128xf32>
    %54 = vector.shape_cast %53 : vector<128xf32> to vector<1x128xf32>
    %55 = arith.addf %42, %54 : vector<1x128xf32>
    %56 = tpu.concatenate %28, %55 in 0 : vector<1x128xf32>, vector<1x128xf32> -> vector<2x128xf32>
    %c0_34 = arith.constant 0 : index
    %c0_35 = arith.constant 0 : index
    %57 = vector.load %arg5[%c0_34, %c0_35] : memref<128x128xf32, #tpu.memory_space<vmem>>, vector<128x128xf32>
    %cst_36 = arith.constant dense<0.000000e+00> : vector<2x128xf32>
    %58 = tpu.matmul %56, %57, %cst_36 {dimension_numbers = #tpu.dot_dimension_numbers<[1], [0], [0], [1], [0, 0, 1, 1], [], []>} : vector<2x128xf32>, vector<128x128xf32>, vector<2x128xf32> -> vector<2x128xf32>
    %c0_37 = arith.constant 0 : index
    %c0_38 = arith.constant 0 : index
    %59 = vector.load %arg6[%c0_37, %c0_38] : memref<1x128xf32, #tpu.memory_space<vmem>>, vector<1x128xf32>
    %60 = vector.broadcast %59 : vector<1x128xf32> to vector<2x128xf32>
    %61 = arith.addf %58, %60 : vector<2x128xf32>
    %c0_39 = arith.constant 0 : index
    %c0_40 = arith.constant 0 : index
    %c0_41 = arith.constant 0 : index
    %62 = vector.load %arg7[%c0_39, %c0_40, %c0_41] : memref<1x2x128xf32, #tpu.memory_space<vmem>>, vector<1x2x128xf32>
    %63 = vector.shape_cast %62 : vector<1x2x128xf32> to vector<2x128xf32>
    %64 = vector.shape_cast %61 : vector<2x128xf32> to vector<1x2x128xf32>
    tpu.vector_store %arg7[%c0_39, %c0_40, %c0_41], %64 {strides = array<i32>} : memref<1x2x128xf32, #tpu.memory_space<vmem>>, vector<1x2x128xf32>,
    return
  }
  func.func @transform_0(%arg0: i32) -> (i32, i32, i32) {
    %c0_i32 = arith.constant 0 : i32
    %c0_i32_0 = arith.constant 0 : i32
    %c0_i32_1 = arith.constant 0 : i32
    return %arg0, %c0_i32, %c0_i32_0 : i32, i32, i32
  }
  func.func @transform_1(%arg0: i32) -> (i32, i32) {
    %c0_i32 = arith.constant 0 : i32
    %c0_i32_0 = arith.constant 0 : i32
    %c0_i32_1 = arith.constant 0 : i32
    return %c0_i32, %c0_i32_0 : i32, i32
  }
  func.func @transform_2(%arg0: i32) -> (i32, i32) {
    %c0_i32 = arith.constant 0 : i32
    %c0_i32_0 = arith.constant 0 : i32
    %c0_i32_1 = arith.constant 0 : i32
    return %c0_i32, %c0_i32_0 : i32, i32
  }
  func.func @transform_3(%arg0: i32) -> (i32, i32) {
    %c0_i32 = arith.constant 0 : i32
    %c0_i32_0 = arith.constant 0 : i32
    %c0_i32_1 = arith.constant 0 : i32
    return %c0_i32, %c0_i32_0 : i32, i32
  }
  func.func @transform_4(%arg0: i32) -> (i32, i32) {
    %c0_i32 = arith.constant 0 : i32
    %c0_i32_0 = arith.constant 0 : i32
    %c0_i32_1 = arith.constant 0 : i32
    return %c0_i32, %c0_i32_0 : i32, i32
  }
  func.func @transform_5(%arg0: i32) -> (i32, i32) {
    %c0_i32 = arith.constant 0 : i32
    %c0_i32_0 = arith.constant 0 : i32
    %c0_i32_1 = arith.constant 0 : i32
    return %c0_i32, %c0_i32_0 : i32, i32
  }
  func.func @transform_6(%arg0: i32) -> (i32, i32, i32) {
    %c0_i32 = arith.constant 0 : i32
    %c0_i32_0 = arith.constant 0 : i32
    %c0_i32_1 = arith.constant 0 : i32
    return %arg0, %c0_i32, %c0_i32_0 : i32, i32, i32
  }
}

</mosaic_0001>

<llo_original>
// kernel: tpu_custom_call.1
$region0: #{tpu_custom_call.1}
  #allocation0 [shape = 'u32[]', space=smem, size = 0x4, offset = 0x4, fixed_abs, tag = 'smem constant byte address 0x4 - core index']
  #allocation1 [shape = 'u32[144,128]{1,0:T(1,128)}', space=vmem, size = 0x12000, scoped, tag = 'internal scratch']
  %s0 = inlined_call_operand.vmem [shape: bf16[2,256,36], index: 0, kind: input, shape index: {}]
  %s1 = inlined_call_operand.vmem [shape: bf16[36,128], index: 1, kind: input, shape index: {}]
  %s2 = inlined_call_operand.vmem [shape: f32[1,128], index: 2, kind: input, shape index: {}]
  %s3 = inlined_call_operand.vmem [shape: f32[256,1], index: 3, kind: input, shape index: {}]
  %s4 = inlined_call_operand.vmem [shape: f32[128,128], index: 4, kind: input, shape index: {}]
  %s5 = inlined_call_operand.vmem [shape: f32[1,128], index: 5, kind: input, shape index: {}]
  %s6 = inlined_call_operand.hbm [shape: f32[1,2,128], index: 6, kind: output, shape index: {}]
  %s7 = sld [smem:[#allocation0]]
  $region34: #{tpu_custom_call.1} parent=0
    _
  %s9 = ssub.s32 1, %s7
  %s10 = scalar_select 0, %s9, %s7
  $region1: #{tpu_custom_call.1} parent=0
    #allocation2 [shape = 'u8[1024]{0}', space=vmem, size = 0x400, scoped, tag = 'output window, operand 0, single buffered']
    #allocation3 [shape = 's32[1]{0}', space=sflag, size = 0x4, scoped, tag = 'scoped memory for tpu_custom_call.1']
    %11 = vsyncpa [#allocation3], 0
    // Predicated region
    $region2: #{tpu_custom_call.1} parent=1 // pred_check
      _
    $region3: #{tpu_custom_call.1} parent=1 // pred_check_branch
      %13 = sbr.rel (0) target = $region5
    $region4: #{tpu_custom_call.1} parent=1 // pred_region
      _
    $region5: #{tpu_custom_call.1} parent=1 // pred_fallthru
      _
    // Predicated region
    $region6: #{tpu_custom_call.1} parent=1 // pred_check
      _
    $region7: #{tpu_custom_call.1} parent=1 // pred_check_branch
      %15 = sbr.rel (0) target = $region9
    $region8: #{tpu_custom_call.1} parent=1 // pred_region
      _
    $region9: #{tpu_custom_call.1} parent=1 // pred_fallthru
      _
    // Predicated region
    $region10: #{tpu_custom_call.1} parent=1 // pred_check
      _
    $region11: #{tpu_custom_call.1} parent=1 // pred_check_branch
      %17 = sbr.rel (0) target = $region13
    $region12: #{tpu_custom_call.1} parent=1 // pred_region
      _
    $region13: #{tpu_custom_call.1} parent=1 // pred_fallthru
      _
    // Predicated region
    $region14: #{tpu_custom_call.1} parent=1 // pred_check
      _
    $region15: #{tpu_custom_call.1} parent=1 // pred_check_branch
      %19 = sbr.rel (0) target = $region17
    $region16: #{tpu_custom_call.1} parent=1 // pred_region
      _
    $region17: #{tpu_custom_call.1} parent=1 // pred_fallthru
      _
    // Predicated region
    $region18: #{tpu_custom_call.1} parent=1 // pred_check
      _
    $region19: #{tpu_custom_call.1} parent=1 // pred_check_branch
      %21 = sbr.rel (0) target = $region21
    $region20: #{tpu_custom_call.1} parent=1 // pred_region
      _
    $region21: #{tpu_custom_call.1} parent=1 // pred_fallthru
      _
    // Predicated region
    $region22: #{tpu_custom_call.1} parent=1 // pred_check
      _
    $region23: #{tpu_custom_call.1} parent=1 // pred_check_branch
      %23 = sbr.rel (0) target = $region25
    $region24: #{tpu_custom_call.1} parent=1 // pred_region
      _
    $region25: #{tpu_custom_call.1} parent=1 // pred_fallthru
      _
    %v25 = vld [vmem:[%s1] sm:$0xf]
    %v26 = vld [vmem:[%s1 + $0x4] sm:$0xf]
    %v27 = vld [vmem:[%s1 + $0x8] sm:$0xf]
    %v28 = vld [vmem:[%s1 + $0xc] sm:$0xf]
    %v29 = vld [vmem:[%s1 + $0x10] sm:$0x3]
    %v30 = vld [vmem:[%s2] sm:$0x1]
    %v31 = vld [vmem:[%s0] sm:$0xf]
    %v32 = vld [vmem:[%s0 + $0x4] sm:$0xf]
    %v33 = vld [vmem:[%s0 + $0x8] sm:$0xf]
    %v34 = vld [vmem:[%s0 + $0xc] sm:$0xf]
    %v35 = vld [vmem:[%s0 + $0x10] sm:$0xf]
    %v36 = vld [vmem:[%s0 + $0x14] sm:$0xf]
    %v37 = vld [vmem:[%s0 + $0x18] sm:$0xf]
    %v38 = vld [vmem:[%s0 + $0x1c] sm:$0xf]
    %v39 = vld [vmem:[%s0 + $0x20] sm:$0xf]
    %v40 = vld [vmem:[%s0 + $0x24] sm:$0xf]
    %v41 = vld [vmem:[%s0 + $0x28] sm:$0xf]
    %v42 = vld [vmem:[%s0 + $0x2c] sm:$0xf]
    %v43 = vld [vmem:[%s0 + $0x30] sm:$0xf]
    %v44 = vld [vmem:[%s0 + $0x34] sm:$0xf]
    %v45 = vld [vmem:[%s0 + $0x38] sm:$0xf]
    %v46 = vld [vmem:[%s0 + $0x3c] sm:$0xf]
    %v48 = vlaneseq
    %v49 = vshrl.u32 %v48, 7
    %v50 = vsub.s32 0, %v49
    %v51 = vrot.slane %v30, %v50
    %v69 = vunpack.c.l.b16 %v31
    %v70 = vunpack.c.l.b16 %v32
    %v71 = vunpack.c.l.b16 %v33
    %v72 = vunpack.c.l.b16 %v34
    %v73 = vunpack.c.l.b16 %v35
    %v74 = vunpack.c.l.b16 %v36
    %v75 = vunpack.c.l.b16 %v37
    %v76 = vunpack.c.l.b16 %v38
    %v77 = vunpack.c.l.b16 %v39
    %v78 = vunpack.c.l.b16 %v40
    %v79 = vunpack.c.l.b16 %v41
    %v80 = vunpack.c.l.b16 %v42
    %v81 = vunpack.c.l.b16 %v43
    %v82 = vunpack.c.l.b16 %v44
    %v83 = vunpack.c.l.b16 %v45
    %v84 = vunpack.c.l.b16 %v46
    %v85 = vpack.c.b16 %v70, %v69
    %v86 = vpack.c.b16 %v72, %v71
    %v87 = vpack.c.b16 %v74, %v73
    %v88 = vpack.c.b16 %v76, %v75
    %v89 = vpack.c.b16 %v78, %v77
    %v90 = vpack.c.b16 %v80, %v79
    %v91 = vpack.c.b16 %v82, %v81
    %v92 = vpack.c.b16 %v84, %v83
    %v98 = vunpack.c.l.b16 %v25
    %v99 = vunpack.c.l.b16 %v26
    %v100 = vunpack.c.l.b16 %v27
    %v101 = vunpack.c.l.b16 %v28
    %v102 = vunpack.c.l.b16 %v29
    %v103 = vpack.c.b16 %v99, %v98
    %v104 = vpack.c.b16 %v101, %v100
    %v105 = vpack.c.b16 %v102, %v102
    %vm108 = vcmask 293888
    %v110 = vsel %vm108, %v85, 0
    %v113 = vsel %vm108, %v86, 0
    %v116 = vsel %vm108, %v87, 0
    %v119 = vsel %vm108, %v88, 0
    %v122 = vsel %vm108, %v89, 0
    %v125 = vsel %vm108, %v90, 0
    %v128 = vsel %vm108, %v91, 0
    %v131 = vsel %vm108, %v92, 0
    %vm133 = vcmask 1041408
    %v135 = vsel %vm133, %v105, 0
    %137 = vmatprep.subr.bf16.mxu0 0
    %138 = vmatpush1.bf16.msra.mxu0 %v103
    %139 = vmatprep.subr.bf16.mxu0 0
    %140 = vmatpush1.bf16.msra.mxu0 %v104
    %141 = vmatprep.subr.bf16.mxu0 0
    %142 = vmatpush1.bf16.msra.mxu0 %v135
    %143 = vmatprep.subr.bf16.mxu0 0
    %144 = vmatpush1.bf16.msra.mxu0 0
    %145 = vmatprep.subr.bf16.mxu0 0
    %146 = vmatpush1.bf16.msra.mxu0 0
    %147 = vmatprep.subr.bf16.mxu0 0
    %148 = vmatpush1.bf16.msra.mxu0 0
    %149 = vmatprep.subr.bf16.mxu0 0
    %150 = vmatpush1.bf16.msra.mxu0 0
    %151 = vmatprep.subr.bf16.mxu0 0
    %152 = vmatpush1.bf16.msra.mxu0 0
    %153 = vmatprep.subr.bf16.mxu0 0
    %154 = vmatpush1.bf16.msra.mxu0 0
    %155 = vmatprep.subr.bf16.mxu0 0
    %156 = vmatpush1.bf16.msra.mxu0 0
    %157 = vmatprep.subr.bf16.mxu0 0
    %158 = vmatpush1.bf16.msra.mxu0 0
    %159 = vmatprep.subr.bf16.mxu0 0
    %160 = vmatpush1.bf16.msra.mxu0 0
    %161 = vmatprep.subr.bf16.mxu0 0
    %162 = vmatpush1.bf16.msra.mxu0 0
    %163 = vmatprep.subr.bf16.mxu0 0
    %164 = vmatpush1.bf16.msra.mxu0 0
    %165 = vmatprep.subr.bf16.mxu0 0
    %166 = vmatpush1.bf16.msra.mxu0 0
    %167 = vmatprep.subr.bf16.mxu0 0
    %168 = vmatpush1.bf16.msra.mxu0 0
    %169 = vmatprep.mubr.bf16.mxu0 0
    %170 = vmatmul.mubr.bf16.gmra.mrb[0].mxu0 %v110
    %v171 = vpop.f32.mrb[0].mxu0
    %v172 = vadd.f32 %v51, %v171
    %v173 = vpop.f32.mrb[0].mxu0
    %v174 = vpop.f32.mrb[0].mxu0
    %v175 = vadd.f32 %v51, %v174
    %v176 = vpop.f32.mrb[0].mxu0
    %177 = vmatprep.mubr.bf16.mxu0 0
    %178 = vmatmul.mubr.bf16.gmra.mrb[0].mxu0 %v113
    %v179 = vpop.f32.mrb[0].mxu0
    %v180 = vadd.f32 %v51, %v179
    %v181 = vpop.f32.mrb[0].mxu0
    %v182 = vpop.f32.mrb[0].mxu0
    %v183 = vadd.f32 %v51, %v182
    %v184 = vpop.f32.mrb[0].mxu0
    %185 = vmatprep.mubr.bf16.mxu0 0
    %186 = vmatmul.mubr.bf16.gmra.mrb[0].mxu0 %v116
    %v187 = vpop.f32.mrb[0].mxu0
    %v188 = vadd.f32 %v51, %v187
    %v189 = vpop.f32.mrb[0].mxu0
    %v190 = vpop.f32.mrb[0].mxu0
    %v191 = vadd.f32 %v51, %v190
    %v192 = vpop.f32.mrb[0].mxu0
    %193 = vmatprep.mubr.bf16.mxu0 0
    %194 = vmatmul.mubr.bf16.gmra.mrb[0].mxu0 %v119
    %v195 = vpop.f32.mrb[0].mxu0
    %v196 = vadd.f32 %v51, %v195
    %v197 = vpop.f32.mrb[0].mxu0
    %v198 = vpop.f32.mrb[0].mxu0
    %v199 = vadd.f32 %v51, %v198
    %v200 = vpop.f32.mrb[0].mxu0
    %201 = vmatprep.mubr.bf16.mxu0 0
    %202 = vmatmul.mubr.bf16.gmra.mrb[0].mxu0 %v122
    %v203 = vpop.f32.mrb[0].mxu0
    %v204 = vadd.f32 %v51, %v203
    %v205 = vpop.f32.mrb[0].mxu0
    %v206 = vpop.f32.mrb[0].mxu0
    %v207 = vadd.f32 %v51, %v206
    %v208 = vpop.f32.mrb[0].mxu0
    %209 = vmatprep.mubr.bf16.mxu0 0
    %210 = vmatmul.mubr.bf16.gmra.mrb[0].mxu0 %v125
    %v211 = vpop.f32.mrb[0].mxu0
    %v212 = vadd.f32 %v51, %v211
    %v213 = vpop.f32.mrb[0].mxu0
    %v214 = vpop.f32.mrb[0].mxu0
    %v215 = vadd.f32 %v51, %v214
    %v216 = vpop.f32.mrb[0].mxu0
    %217 = vmatprep.mubr.bf16.mxu0 0
    %218 = vmatmul.mubr.bf16.gmra.mrb[0].mxu0 %v128
    %v219 = vpop.f32.mrb[0].mxu0
    %v220 = vadd.f32 %v51, %v219
    %v221 = vpop.f32.mrb[0].mxu0
    %v222 = vpop.f32.mrb[0].mxu0
    %v223 = vadd.f32 %v51, %v222
    %v224 = vpop.f32.mrb[0].mxu0
    %225 = vmatprep.mubr.bf16.mxu0 0
    %226 = vmatmul.mubr.bf16.gmra.mrb[0].mxu0 %v131
    %v227 = vpop.f32.mrb[0].mxu0
    %v228 = vadd.f32 %v51, %v227
    %v229 = vpop.f32.mrb[0].mxu0
    %v230 = vpop.f32.mrb[0].mxu0
    %v231 = vadd.f32 %v51, %v230
    %v232 = vpop.f32.mrb[0].mxu0
    %233 = vdwg.mxu0
    %v234 = vmax.f32 %v172, 0.0
    %v235 = vmax.f32 %v175, 0.0
    %v236 = vmax.f32 %v180, 0.0
    %v237 = vmax.f32 %v183, 0.0
    %v238 = vmax.f32 %v188, 0.0
    %v239 = vmax.f32 %v191, 0.0
    %v240 = vmax.f32 %v196, 0.0
    %v241 = vmax.f32 %v199, 0.0
    %v242 = vmax.f32 %v204, 0.0
    %v243 = vmax.f32 %v207, 0.0
    %v244 = vmax.f32 %v212, 0.0
    %v245 = vmax.f32 %v215, 0.0
    %v246 = vmax.f32 %v220, 0.0
    %v247 = vmax.f32 %v223, 0.0
    %v248 = vmax.f32 %v228, 0.0
    %v249 = vmax.f32 %v231, 0.0
    %v250 = vld [vmem:[%s3] sm:$0xff]
    %v251 = vld [vmem:[%s3 + $0x8] sm:$0xff]
    %v252 = vld [vmem:[%s3 + $0x10] sm:$0xff]
    %v253 = vld [vmem:[%s3 + $0x18] sm:$0xff]
    %v254 = vld [vmem:[%s3 + $0x20] sm:$0xff]
    %v255 = vld [vmem:[%s3 + $0x28] sm:$0xff]
    %v256 = vld [vmem:[%s3 + $0x30] sm:$0xff]
    %v257 = vld [vmem:[%s3 + $0x38] sm:$0xff]
    %v258 = vld [vmem:[%s3 + $0x40] sm:$0xff]
    %v259 = vld [vmem:[%s3 + $0x48] sm:$0xff]
    %v260 = vld [vmem:[%s3 + $0x50] sm:$0xff]
    %v261 = vld [vmem:[%s3 + $0x58] sm:$0xff]
    %v262 = vld [vmem:[%s3 + $0x60] sm:$0xff]
    %v263 = vld [vmem:[%s3 + $0x68] sm:$0xff]
    %v264 = vld [vmem:[%s3 + $0x70] sm:$0xff]
    %v265 = vld [vmem:[%s3 + $0x78] sm:$0xff]
    %267 = vset.pattern.permute.xlu0 0
    %268 = vperm.xlu0 %267, %v250
    %v269 = vpop.permute.xlu0 %268
    %272 = vset.pattern.permute.xlu0 0
    %273 = vperm.xlu0 %272, %v251
    %v274 = vpop.permute.xlu0 %273
    %277 = vset.pattern.permute.xlu0 0
    %278 = vperm.xlu0 %277, %v252
    %v279 = vpop.permute.xlu0 %278
    %282 = vset.pattern.permute.xlu0 0
    %283 = vperm.xlu0 %282, %v253
    %v284 = vpop.permute.xlu0 %283
    %287 = vset.pattern.permute.xlu0 0
    %288 = vperm.xlu0 %287, %v254
    %v289 = vpop.permute.xlu0 %288
    %292 = vset.pattern.permute.xlu0 0
    %293 = vperm.xlu0 %292, %v255
    %v294 = vpop.permute.xlu0 %293
    %297 = vset.pattern.permute.xlu0 0
    %298 = vperm.xlu0 %297, %v256
    %v299 = vpop.permute.xlu0 %298
    %302 = vset.pattern.permute.xlu0 0
    %303 = vperm.xlu0 %302, %v257
    %v304 = vpop.permute.xlu0 %303
    %307 = vset.pattern.permute.xlu0 0
    %308 = vperm.xlu0 %307, %v258
    %v309 = vpop.permute.xlu0 %308
    %312 = vset.pattern.permute.xlu0 0
    %313 = vperm.xlu0 %312, %v259
    %v314 = vpop.permute.xlu0 %313
    %317 = vset.pattern.permute.xlu0 0
    %318 = vperm.xlu0 %317, %v260
    %v319 = vpop.permute.xlu0 %318
    %322 = vset.pattern.permute.xlu0 0
    %323 = vperm.xlu0 %322, %v261
    %v324 = vpop.permute.xlu0 %323
    %327 = vset.pattern.permute.xlu0 0
    %328 = vperm.xlu0 %327, %v262
    %v329 = vpop.permute.xlu0 %328
    %332 = vset.pattern.permute.xlu0 0
    %333 = vperm.xlu0 %332, %v263
    %v334 = vpop.permute.xlu0 %333
    %337 = vset.pattern.permute.xlu0 0
    %338 = vperm.xlu0 %337, %v264
    %v339 = vpop.permute.xlu0 %338
    %342 = vset.pattern.permute.xlu0 0
    %343 = vperm.xlu0 %342, %v265
    %v344 = vpop.permute.xlu0 %343
    %v346 = vmul.f32 %v234, %v269
    %v347 = vmul.f32 %v235, %v274
    %v348 = vmul.f32 %v236, %v279
    %v349 = vmul.f32 %v237, %v284
    %v350 = vmul.f32 %v238, %v289
    %v351 = vmul.f32 %v239, %v294
    %v352 = vmul.f32 %v240, %v299
    %v353 = vmul.f32 %v241, %v304
    %v354 = vmul.f32 %v242, %v309
    %v355 = vmul.f32 %v243, %v314
    %v356 = vmul.f32 %v244, %v319
    %v357 = vmul.f32 %v245, %v324
    %v358 = vmul.f32 %v246, %v329
    %v359 = vmul.f32 %v247, %v334
    %v360 = vmul.f32 %v248, %v339
    %v361 = vmul.f32 %v249, %v344
    %v362 = vadd.f32 %v346, %v347
    %v363 = vadd.f32 %v362, %v348
    %v364 = vadd.f32 %v363, %v349
    %v365 = vadd.f32 %v364, %v350
    %v366 = vadd.f32 %v365, %v351
    %v367 = vadd.f32 %v366, %v352
    %v368 = vadd.f32 %v367, %v353
    %v369 = vadd.f32 %v368, %v354
    %v370 = vadd.f32 %v369, %v355
    %v371 = vadd.f32 %v370, %v356
    %v372 = vadd.f32 %v371, %v357
    %v373 = vadd.f32 %v372, %v358
    %v374 = vadd.f32 %v373, %v359
    %v375 = vadd.f32 %v374, %v360
    %v376 = vadd.f32 %v375, %v361
    %v377 = vrot.slane %v376, 4
    %v378 = vadd.f32 %v376, %v377
    %v379 = vrot.slane %v378, 2
    %v380 = vadd.f32 %v378, %v379
    %v381 = vrot.slane %v380, 1
    %v382 = vadd.f32 %v380, %v381
    %v383 = vadd.f32 %v382, 0.0
    %v384 = vld [vmem:[%s0 + $0x40] sm:$0xf]
    %v385 = vld [vmem:[%s0 + $0x44] sm:$0xf]
    %v386 = vld [vmem:[%s0 + $0x48] sm:$0xf]
    %v387 = vld [vmem:[%s0 + $0x4c] sm:$0xf]
    %v388 = vld [vmem:[%s0 + $0x50] sm:$0xf]
    %v389 = vld [vmem:[%s0 + $0x54] sm:$0xf]
    %v390 = vld [vmem:[%s0 + $0x58] sm:$0xf]
    %v391 = vld [vmem:[%s0 + $0x5c] sm:$0xf]
    %v392 = vld [vmem:[%s0 + $0x60] sm:$0xf]
    %v393 = vld [vmem:[%s0 + $0x64] sm:$0xf]
    %v394 = vld [vmem:[%s0 + $0x68] sm:$0xf]
    %v395 = vld [vmem:[%s0 + $0x6c] sm:$0xf]
    %v396 = vld [vmem:[%s0 + $0x70] sm:$0xf]
    %v397 = vld [vmem:[%s0 + $0x74] sm:$0xf]
    %v398 = vld [vmem:[%s0 + $0x78] sm:$0xf]
    %v399 = vld [vmem:[%s0 + $0x7c] sm:$0xf]
    %v416 = vunpack.c.l.b16 %v384
    %v417 = vunpack.c.l.b16 %v385
    %v418 = vunpack.c.l.b16 %v386
    %v419 = vunpack.c.l.b16 %v387
    %v420 = vunpack.c.l.b16 %v388
    %v421 = vunpack.c.l.b16 %v389
    %v422 = vunpack.c.l.b16 %v390
    %v423 = vunpack.c.l.b16 %v391
    %v424 = vunpack.c.l.b16 %v392
    %v425 = vunpack.c.l.b16 %v393
    %v426 = vunpack.c.l.b16 %v394
    %v427 = vunpack.c.l.b16 %v395
    %v428 = vunpack.c.l.b16 %v396
    %v429 = vunpack.c.l.b16 %v397
    %v430 = vunpack.c.l.b16 %v398
    %v431 = vunpack.c.l.b16 %v399
    %v432 = vpack.c.b16 %v417, %v416
    %v433 = vpack.c.b16 %v419, %v418
    %v434 = vpack.c.b16 %v421, %v420
    %v435 = vpack.c.b16 %v423, %v422
    %v436 = vpack.c.b16 %v425, %v424
    %v437 = vpack.c.b16 %v427, %v426
    %v438 = vpack.c.b16 %v429, %v428
    %v439 = vpack.c.b16 %v431, %v430
    %v441 = vsel %vm108, %v432, 0
    %v444 = vsel %vm108, %v433, 0
    %v447 = vsel %vm108, %v434, 0
    %v450 = vsel %vm108, %v435, 0
    %v453 = vsel %vm108, %v436, 0
    %v456 = vsel %vm108, %v437, 0
    %v459 = vsel %vm108, %v438, 0
    %v462 = vsel %vm108, %v439, 0
    %464 = vmatprep.subr.bf16.mxu0 0
    %465 = vmatpush1.bf16.msra.mxu0 %v103
    %466 = vmatprep.subr.bf16.mxu0 0
    %467 = vmatpush1.bf16.msra.mxu0 %v104
    %468 = vmatprep.subr.bf16.mxu0 0
    %469 = vmatpush1.bf16.msra.mxu0 %v135
    %470 = vmatprep.subr.bf16.mxu0 0
    %471 = vmatpush1.bf16.msra.mxu0 0
    %472 = vmatprep.subr.bf16.mxu0 0
    %473 = vmatpush1.bf16.msra.mxu0 0
    %474 = vmatprep.subr.bf16.mxu0 0
    %475 = vmatpush1.bf16.msra.mxu0 0
    %476 = vmatprep.subr.bf16.mxu0 0
    %477 = vmatpush1.bf16.msra.mxu0 0
    %478 = vmatprep.subr.bf16.mxu0 0
    %479 = vmatpush1.bf16.msra.mxu0 0
    %480 = vmatprep.subr.bf16.mxu0 0
    %481 = vmatpush1.bf16.msra.mxu0 0
    %482 = vmatprep.subr.bf16.mxu0 0
    %483 = vmatpush1.bf16.msra.mxu0 0
    %484 = vmatprep.subr.bf16.mxu0 0
    %485 = vmatpush1.bf16.msra.mxu0 0
    %486 = vmatprep.subr.bf16.mxu0 0
    %487 = vmatpush1.bf16.msra.mxu0 0
    %488 = vmatprep.subr.bf16.mxu0 0
    %489 = vmatpush1.bf16.msra.mxu0 0
    %490 = vmatprep.subr.bf16.mxu0 0
    %491 = vmatpush1.bf16.msra.mxu0 0
    %492 = vmatprep.subr.bf16.mxu0 0
    %493 = vmatpush1.bf16.msra.mxu0 0
    %494 = vmatprep.subr.bf16.mxu0 0
    %495 = vmatpush1.bf16.msra.mxu0 0
    %496 = vmatprep.mubr.bf16.mxu0 0
    %497 = vmatmul.mubr.bf16.gmra.mrb[0].mxu0 %v441
    %v498 = vpop.f32.mrb[0].mxu0
    %v499 = vadd.f32 %v51, %v498
    %v500 = vpop.f32.mrb[0].mxu0
    %v501 = vpop.f32.mrb[0].mxu0
    %v502 = vadd.f32 %v51, %v501
    %v503 = vpop.f32.mrb[0].mxu0
    %504 = vmatprep.mubr.bf16.mxu0 0
    %505 = vmatmul.mubr.bf16.gmra.mrb[0].mxu0 %v444
    %v506 = vpop.f32.mrb[0].mxu0
    %v507 = vadd.f32 %v51, %v506
    %v508 = vpop.f32.mrb[0].mxu0
    %v509 = vpop.f32.mrb[0].mxu0
    %v510 = vadd.f32 %v51, %v509
    %v511 = vpop.f32.mrb[0].mxu0
    %512 = vmatprep.mubr.bf16.mxu0 0
    %513 = vmatmul.mubr.bf16.gmra.mrb[0].mxu0 %v447
    %v514 = vpop.f32.mrb[0].mxu0
    %v515 = vadd.f32 %v51, %v514
    %v516 = vpop.f32.mrb[0].mxu0
    %v517 = vpop.f32.mrb[0].mxu0
    %v518 = vadd.f32 %v51, %v517
    %v519 = vpop.f32.mrb[0].mxu0
    %520 = vmatprep.mubr.bf16.mxu0 0
    %521 = vmatmul.mubr.bf16.gmra.mrb[0].mxu0 %v450
    %v522 = vpop.f32.mrb[0].mxu0
    %v523 = vadd.f32 %v51, %v522
    %v524 = vpop.f32.mrb[0].mxu0
    %v525 = vpop.f32.mrb[0].mxu0
    %v526 = vadd.f32 %v51, %v525
    %v527 = vpop.f32.mrb[0].mxu0
    %528 = vmatprep.mubr.bf16.mxu0 0
    %529 = vmatmul.mubr.bf16.gmra.mrb[0].mxu0 %v453
    %v530 = vpop.f32.mrb[0].mxu0
    %v531 = vadd.f32 %v51, %v530
    %v532 = vpop.f32.mrb[0].mxu0
    %v533 = vpop.f32.mrb[0].mxu0
    %v534 = vadd.f32 %v51, %v533
    %v535 = vpop.f32.mrb[0].mxu0
    %536 = vmatprep.mubr.bf16.mxu0 0
    %537 = vmatmul.mubr.bf16.gmra.mrb[0].mxu0 %v456
    %v538 = vpop.f32.mrb[0].mxu0
    %v539 = vadd.f32 %v51, %v538
    %v540 = vpop.f32.mrb[0].mxu0
    %v541 = vpop.f32.mrb[0].mxu0
    %v542 = vadd.f32 %v51, %v541
    %v543 = vpop.f32.mrb[0].mxu0
    %544 = vmatprep.mubr.bf16.mxu0 0
    %545 = vmatmul.mubr.bf16.gmra.mrb[0].mxu0 %v459
    %v546 = vpop.f32.mrb[0].mxu0
    %v547 = vadd.f32 %v51, %v546
    %v548 = vpop.f32.mrb[0].mxu0
    %v549 = vpop.f32.mrb[0].mxu0
    %v550 = vadd.f32 %v51, %v549
    %v551 = vpop.f32.mrb[0].mxu0
    %552 = vmatprep.mubr.bf16.mxu0 0
    %553 = vmatmul.mubr.bf16.gmra.mrb[0].mxu0 %v462
    %v554 = vpop.f32.mrb[0].mxu0
    %v555 = vadd.f32 %v51, %v554
    %v556 = vpop.f32.mrb[0].mxu0
    %v557 = vpop.f32.mrb[0].mxu0
    %v558 = vadd.f32 %v51, %v557
    %v559 = vpop.f32.mrb[0].mxu0
    %560 = vdwg.mxu0
    %v561 = vmax.f32 %v499, 0.0
    %v562 = vmax.f32 %v502, 0.0
    %v563 = vmax.f32 %v507, 0.0
    %v564 = vmax.f32 %v510, 0.0
    %v565 = vmax.f32 %v515, 0.0
    %v566 = vmax.f32 %v518, 0.0
    %v567 = vmax.f32 %v523, 0.0
    %v568 = vmax.f32 %v526, 0.0
    %v569 = vmax.f32 %v531, 0.0
    %v570 = vmax.f32 %v534, 0.0
    %v571 = vmax.f32 %v539, 0.0
    %v572 = vmax.f32 %v542, 0.0
    %v573 = vmax.f32 %v547, 0.0
    %v574 = vmax.f32 %v550, 0.0
    %v575 = vmax.f32 %v555, 0.0
    %v576 = vmax.f32 %v558, 0.0
    %v577 = vld [vmem:[%s3 + $0x80] sm:$0xff]
    %v578 = vld [vmem:[%s3 + $0x88] sm:$0xff]
    %v579 = vld [vmem:[%s3 + $0x90] sm:$0xff]
    %v580 = vld [vmem:[%s3 + $0x98] sm:$0xff]
    %v581 = vld [vmem:[%s3 + $0xa0] sm:$0xff]
    %v582 = vld [vmem:[%s3 + $0xa8] sm:$0xff]
    %v583 = vld [vmem:[%s3 + $0xb0] sm:$0xff]
    %v584 = vld [vmem:[%s3 + $0xb8] sm:$0xff]
    %v585 = vld [vmem:[%s3 + $0xc0] sm:$0xff]
    %v586 = vld [vmem:[%s3 + $0xc8] sm:$0xff]
    %v587 = vld [vmem:[%s3 + $0xd0] sm:$0xff]
    %v588 = vld [vmem:[%s3 + $0xd8] sm:$0xff]
    %v589 = vld [vmem:[%s3 + $0xe0] sm:$0xff]
    %v590 = vld [vmem:[%s3 + $0xe8] sm:$0xff]
    %v591 = vld [vmem:[%s3 + $0xf0] sm:$0xff]
    %v592 = vld [vmem:[%s3 + $0xf8] sm:$0xff]
    %594 = vset.pattern.permute.xlu0 0
    %595 = vperm.xlu0 %594, %v577
    %v596 = vpop.permute.xlu0 %595
    %599 = vset.pattern.permute.xlu0 0
    %600 = vperm.xlu0 %599, %v578
    %v601 = vpop.permute.xlu0 %600
    %604 = vset.pattern.permute.xlu0 0
    %605 = vperm.xlu0 %604, %v579
    %v606 = vpop.permute.xlu0 %605
    %609 = vset.pattern.permute.xlu0 0
    %610 = vperm.xlu0 %609, %v580
    %v611 = vpop.permute.xlu0 %610
    %614 = vset.pattern.permute.xlu0 0
    %615 = vperm.xlu0 %614, %v581
    %v616 = vpop.permute.xlu0 %615
    %619 = vset.pattern.permute.xlu0 0
    %620 = vperm.xlu0 %619, %v582
    %v621 = vpop.permute.xlu0 %620
    %624 = vset.pattern.permute.xlu0 0
    %625 = vperm.xlu0 %624, %v583
    %v626 = vpop.permute.xlu0 %625
    %629 = vset.pattern.permute.xlu0 0
    %630 = vperm.xlu0 %629, %v584
    %v631 = vpop.permute.xlu0 %630
    %634 = vset.pattern.permute.xlu0 0
    %635 = vperm.xlu0 %634, %v585
    %v636 = vpop.permute.xlu0 %635
    %639 = vset.pattern.permute.xlu0 0
    %640 = vperm.xlu0 %639, %v586
    %v641 = vpop.permute.xlu0 %640
    %644 = vset.pattern.permute.xlu0 0
    %645 = vperm.xlu0 %644, %v587
    %v646 = vpop.permute.xlu0 %645
    %649 = vset.pattern.permute.xlu0 0
    %650 = vperm.xlu0 %649, %v588
    %v651 = vpop.permute.xlu0 %650
    %654 = vset.pattern.permute.xlu0 0
    %655 = vperm.xlu0 %654, %v589
    %v656 = vpop.permute.xlu0 %655
    %659 = vset.pattern.permute.xlu0 0
    %660 = vperm.xlu0 %659, %v590
    %v661 = vpop.permute.xlu0 %660
    %664 = vset.pattern.permute.xlu0 0
    %665 = vperm.xlu0 %664, %v591
    %v666 = vpop.permute.xlu0 %665
    %669 = vset.pattern.permute.xlu0 0
    %670 = vperm.xlu0 %669, %v592
    %v671 = vpop.permute.xlu0 %670
    %v673 = vmul.f32 %v561, %v596
    %v674 = vmul.f32 %v562, %v601
    %v675 = vmul.f32 %v563, %v606
    %v676 = vmul.f32 %v564, %v611
    %v677 = vmul.f32 %v565, %v616
    %v678 = vmul.f32 %v566, %v621
    %v679 = vmul.f32 %v567, %v626
    %v680 = vmul.f32 %v568, %v631
    %v681 = vmul.f32 %v569, %v636
    %v682 = vmul.f32 %v570, %v641
    %v683 = vmul.f32 %v571, %v646
    %v684 = vmul.f32 %v572, %v651
    %v685 = vmul.f32 %v573, %v656
    %v686 = vmul.f32 %v574, %v661
    %v687 = vmul.f32 %v575, %v666
    %v688 = vmul.f32 %v576, %v671
    %v689 = vadd.f32 %v673, %v674
    %v690 = vadd.f32 %v689, %v675
    %v691 = vadd.f32 %v690, %v676
    %v692 = vadd.f32 %v691, %v677
    %v693 = vadd.f32 %v692, %v678
    %v694 = vadd.f32 %v693, %v679
    %v695 = vadd.f32 %v694, %v680
    %v696 = vadd.f32 %v695, %v681
    %v697 = vadd.f32 %v696, %v682
    %v698 = vadd.f32 %v697, %v683
    %v699 = vadd.f32 %v698, %v684
    %v700 = vadd.f32 %v699, %v685
    %v701 = vadd.f32 %v700, %v686
    %v702 = vadd.f32 %v701, %v687
    %v703 = vadd.f32 %v702, %v688
    %v704 = vrot.slane %v703, 4
    %v705 = vadd.f32 %v703, %v704
    %v706 = vrot.slane %v705, 2
    %v707 = vadd.f32 %v705, %v706
    %v708 = vrot.slane %v707, 1
    %v709 = vadd.f32 %v707, %v708
    %v710 = vadd.f32 %v383, %v709
    %s711 = scalar_lea.vmem %s0, 128
    %v712 = vld [vmem:[%s711] sm:$0xf]
    %v713 = vld [vmem:[%s711 + $0x4] sm:$0xf]
    %v714 = vld [vmem:[%s711 + $0x8] sm:$0xf]
    %v715 = vld [vmem:[%s711 + $0xc] sm:$0xf]
    %v716 = vld [vmem:[%s711 + $0x10] sm:$0xf]
    %v717 = vld [vmem:[%s711 + $0x14] sm:$0xf]
    %v718 = vld [vmem:[%s711 + $0x18] sm:$0xf]
    %v719 = vld [vmem:[%s711 + $0x1c] sm:$0xf]
    %v720 = vld [vmem:[%s711 + $0x20] sm:$0xf]
    %v721 = vld [vmem:[%s711 + $0x24] sm:$0xf]
    %v722 = vld [vmem:[%s711 + $0x28] sm:$0xf]
    %v723 = vld [vmem:[%s711 + $0x2c] sm:$0xf]
    %v724 = vld [vmem:[%s711 + $0x30] sm:$0xf]
    %v725 = vld [vmem:[%s711 + $0x34] sm:$0xf]
    %v726 = vld [vmem:[%s711 + $0x38] sm:$0xf]
    %v727 = vld [vmem:[%s711 + $0x3c] sm:$0xf]
    %v744 = vunpack.c.l.b16 %v712
    %v745 = vunpack.c.l.b16 %v713
    %v746 = vunpack.c.l.b16 %v714
    %v747 = vunpack.c.l.b16 %v715
    %v748 = vunpack.c.l.b16 %v716
    %v749 = vunpack.c.l.b16 %v717
    %v750 = vunpack.c.l.b16 %v718
    %v751 = vunpack.c.l.b16 %v719
    %v752 = vunpack.c.l.b16 %v720
    %v753 = vunpack.c.l.b16 %v721
    %v754 = vunpack.c.l.b16 %v722
    %v755 = vunpack.c.l.b16 %v723
    %v756 = vunpack.c.l.b16 %v724
    %v757 = vunpack.c.l.b16 %v725
    %v758 = vunpack.c.l.b16 %v726
    %v759 = vunpack.c.l.b16 %v727
    %v760 = vpack.c.b16 %v745, %v744
    %v761 = vpack.c.b16 %v747, %v746
    %v762 = vpack.c.b16 %v749, %v748
    %v763 = vpack.c.b16 %v751, %v750
    %v764 = vpack.c.b16 %v753, %v752
    %v765 = vpack.c.b16 %v755, %v754
    %v766 = vpack.c.b16 %v757, %v756
    %v767 = vpack.c.b16 %v759, %v758
    %v769 = vsel %vm108, %v760, 0
    %v772 = vsel %vm108, %v761, 0
    %v775 = vsel %vm108, %v762, 0
    %v778 = vsel %vm108, %v763, 0
    %v781 = vsel %vm108, %v764, 0
    %v784 = vsel %vm108, %v765, 0
    %v787 = vsel %vm108, %v766, 0
    %v790 = vsel %vm108, %v767, 0
    %792 = vmatprep.subr.bf16.mxu0 0
    %793 = vmatpush1.bf16.msra.mxu0 %v103
    %794 = vmatprep.subr.bf16.mxu0 0
    %795 = vmatpush1.bf16.msra.mxu0 %v104
    %796 = vmatprep.subr.bf16.mxu0 0
    %797 = vmatpush1.bf16.msra.mxu0 %v135
    %798 = vmatprep.subr.bf16.mxu0 0
    %799 = vmatpush1.bf16.msra.mxu0 0
    %800 = vmatprep.subr.bf16.mxu0 0
    %801 = vmatpush1.bf16.msra.mxu0 0
    %802 = vmatprep.subr.bf16.mxu0 0
    %803 = vmatpush1.bf16.msra.mxu0 0
    %804 = vmatprep.subr.bf16.mxu0 0
    %805 = vmatpush1.bf16.msra.mxu0 0
    %806 = vmatprep.subr.bf16.mxu0 0
    %807 = vmatpush1.bf16.msra.mxu0 0
    %808 = vmatprep.subr.bf16.mxu0 0
    %809 = vmatpush1.bf16.msra.mxu0 0
    %810 = vmatprep.subr.bf16.mxu0 0
    %811 = vmatpush1.bf16.msra.mxu0 0
    %812 = vmatprep.subr.bf16.mxu0 0
    %813 = vmatpush1.bf16.msra.mxu0 0
    %814 = vmatprep.subr.bf16.mxu0 0
    %815 = vmatpush1.bf16.msra.mxu0 0
    %816 = vmatprep.subr.bf16.mxu0 0
    %817 = vmatpush1.bf16.msra.mxu0 0
    %818 = vmatprep.subr.bf16.mxu0 0
    %819 = vmatpush1.bf16.msra.mxu0 0
    %820 = vmatprep.subr.bf16.mxu0 0
    %821 = vmatpush1.bf16.msra.mxu0 0
    %822 = vmatprep.subr.bf16.mxu0 0
    %823 = vmatpush1.bf16.msra.mxu0 0
    %824 = vmatprep.mubr.bf16.mxu0 0
    %825 = vmatmul.mubr.bf16.gmra.mrb[0].mxu0 %v769
    %v826 = vpop.f32.mrb[0].mxu0
    %v827 = vadd.f32 %v51, %v826
    %v828 = vpop.f32.mrb[0].mxu0
    %v829 = vpop.f32.mrb[0].mxu0
    %v830 = vadd.f32 %v51, %v829
    %v831 = vpop.f32.mrb[0].mxu0
    %832 = vmatprep.mubr.bf16.mxu0 0
    %833 = vmatmul.mubr.bf16.gmra.mrb[0].mxu0 %v772
    %v834 = vpop.f32.mrb[0].mxu0
    %v835 = vadd.f32 %v51, %v834
    %v836 = vpop.f32.mrb[0].mxu0
    %v837 = vpop.f32.mrb[0].mxu0
    %v838 = vadd.f32 %v51, %v837
    %v839 = vpop.f32.mrb[0].mxu0
    %840 = vmatprep.mubr.bf16.mxu0 0
    %841 = vmatmul.mubr.bf16.gmra.mrb[0].mxu0 %v775
    %v842 = vpop.f32.mrb[0].mxu0
    %v843 = vadd.f32 %v51, %v842
    %v844 = vpop.f32.mrb[0].mxu0
    %v845 = vpop.f32.mrb[0].mxu0
    %v846 = vadd.f32 %v51, %v845
    %v847 = vpop.f32.mrb[0].mxu0
    %848 = vmatprep.mubr.bf16.mxu0 0
    %849 = vmatmul.mubr.bf16.gmra.mrb[0].mxu0 %v778
    %v850 = vpop.f32.mrb[0].mxu0
    %v851 = vadd.f32 %v51, %v850
    %v852 = vpop.f32.mrb[0].mxu0
    %v853 = vpop.f32.mrb[0].mxu0
    %v854 = vadd.f32 %v51, %v853
    %v855 = vpop.f32.mrb[0].mxu0
    %856 = vmatprep.mubr.bf16.mxu0 0
    %857 = vmatmul.mubr.bf16.gmra.mrb[0].mxu0 %v781
    %v858 = vpop.f32.mrb[0].mxu0
    %v859 = vadd.f32 %v51, %v858
    %v860 = vpop.f32.mrb[0].mxu0
    %v861 = vpop.f32.mrb[0].mxu0
    %v862 = vadd.f32 %v51, %v861
    %v863 = vpop.f32.mrb[0].mxu0
    %864 = vmatprep.mubr.bf16.mxu0 0
    %865 = vmatmul.mubr.bf16.gmra.mrb[0].mxu0 %v784
    %v866 = vpop.f32.mrb[0].mxu0
    %v867 = vadd.f32 %v51, %v866
    %v868 = vpop.f32.mrb[0].mxu0
    %v869 = vpop.f32.mrb[0].mxu0
    %v870 = vadd.f32 %v51, %v869
    %v871 = vpop.f32.mrb[0].mxu0
    %872 = vmatprep.mubr.bf16.mxu0 0
    %873 = vmatmul.mubr.bf16.gmra.mrb[0].mxu0 %v787
    %v874 = vpop.f32.mrb[0].mxu0
    %v875 = vadd.f32 %v51, %v874
    %v876 = vpop.f32.mrb[0].mxu0
    %v877 = vpop.f32.mrb[0].mxu0
    %v878 = vadd.f32 %v51, %v877
    %v879 = vpop.f32.mrb[0].mxu0
    %880 = vmatprep.mubr.bf16.mxu0 0
    %881 = vmatmul.mubr.bf16.gmra.mrb[0].mxu0 %v790
    %v882 = vpop.f32.mrb[0].mxu0
    %v883 = vadd.f32 %v51, %v882
    %v884 = vpop.f32.mrb[0].mxu0
    %v885 = vpop.f32.mrb[0].mxu0
    %v886 = vadd.f32 %v51, %v885
    %v887 = vpop.f32.mrb[0].mxu0
    %888 = vdwg.mxu0
    %v889 = vmax.f32 %v827, 0.0
    %v890 = vmax.f32 %v830, 0.0
    %v891 = vmax.f32 %v835, 0.0
    %v892 = vmax.f32 %v838, 0.0
    %v893 = vmax.f32 %v843, 0.0
    %v894 = vmax.f32 %v846, 0.0
    %v895 = vmax.f32 %v851, 0.0
    %v896 = vmax.f32 %v854, 0.0
    %v897 = vmax.f32 %v859, 0.0
    %v898 = vmax.f32 %v862, 0.0
    %v899 = vmax.f32 %v867, 0.0
    %v900 = vmax.f32 %v870, 0.0
    %v901 = vmax.f32 %v875, 0.0
    %v902 = vmax.f32 %v878, 0.0
    %v903 = vmax.f32 %v883, 0.0
    %v904 = vmax.f32 %v886, 0.0
    %v905 = vmul.f32 %v889, %v269
    %v906 = vmul.f32 %v890, %v274
    %v907 = vmul.f32 %v891, %v279
    %v908 = vmul.f32 %v892, %v284
    %v909 = vmul.f32 %v893, %v289
    %v910 = vmul.f32 %v894, %v294
    %v911 = vmul.f32 %v895, %v299
    %v912 = vmul.f32 %v896, %v304
    %v913 = vmul.f32 %v897, %v309
    %v914 = vmul.f32 %v898, %v314
    %v915 = vmul.f32 %v899, %v319
    %v916 = vmul.f32 %v900, %v324
    %v917 = vmul.f32 %v901, %v329
    %v918 = vmul.f32 %v902, %v334
    %v919 = vmul.f32 %v903, %v339
    %v920 = vmul.f32 %v904, %v344
    %v921 = vadd.f32 %v905, %v906
    %v922 = vadd.f32 %v921, %v907
    %v923 = vadd.f32 %v922, %v908
    %v924 = vadd.f32 %v923, %v909
    %v925 = vadd.f32 %v924, %v910
    %v926 = vadd.f32 %v925, %v911
    %v927 = vadd.f32 %v926, %v912
    %v928 = vadd.f32 %v927, %v913
    %v929 = vadd.f32 %v928, %v914
    %v930 = vadd.f32 %v929, %v915
    %v931 = vadd.f32 %v930, %v916
    %v932 = vadd.f32 %v931, %v917
    %v933 = vadd.f32 %v932, %v918
    %v934 = vadd.f32 %v933, %v919
    %v935 = vadd.f32 %v934, %v920
    %v936 = vrot.slane %v935, 4
    %v937 = vadd.f32 %v935, %v936
    %v938 = vrot.slane %v937, 2
    %v939 = vadd.f32 %v937, %v938
    %v940 = vrot.slane %v939, 1
    %v941 = vadd.f32 %v939, %v940
    %v942 = vadd.f32 %v941, 0.0
    %v943 = vld [vmem:[%s711 + $0x40] sm:$0xf]
    %v944 = vld [vmem:[%s711 + $0x44] sm:$0xf]
    %v945 = vld [vmem:[%s711 + $0x48] sm:$0xf]
    %v946 = vld [vmem:[%s711 + $0x4c] sm:$0xf]
    %v947 = vld [vmem:[%s711 + $0x50] sm:$0xf]
    %v948 = vld [vmem:[%s711 + $0x54] sm:$0xf]
    %v949 = vld [vmem:[%s711 + $0x58] sm:$0xf]
    %v950 = vld [vmem:[%s711 + $0x5c] sm:$0xf]
    %v951 = vld [vmem:[%s711 + $0x60] sm:$0xf]
    %v952 = vld [vmem:[%s711 + $0x64] sm:$0xf]
    %v953 = vld [vmem:[%s711 + $0x68] sm:$0xf]
    %v954 = vld [vmem:[%s711 + $0x6c] sm:$0xf]
    %v955 = vld [vmem:[%s711 + $0x70] sm:$0xf]
    %v956 = vld [vmem:[%s711 + $0x74] sm:$0xf]
    %v957 = vld [vmem:[%s711 + $0x78] sm:$0xf]
    %v958 = vld [vmem:[%s711 + $0x7c] sm:$0xf]
    %v975 = vunpack.c.l.b16 %v943
    %v976 = vunpack.c.l.b16 %v944
    %v977 = vunpack.c.l.b16 %v945
    %v978 = vunpack.c.l.b16 %v946
    %v979 = vunpack.c.l.b16 %v947
    %v980 = vunpack.c.l.b16 %v948
    %v981 = vunpack.c.l.b16 %v949
    %v982 = vunpack.c.l.b16 %v950
    %v983 = vunpack.c.l.b16 %v951
    %v984 = vunpack.c.l.b16 %v952
    %v985 = vunpack.c.l.b16 %v953
    %v986 = vunpack.c.l.b16 %v954
    %v987 = vunpack.c.l.b16 %v955
    %v988 = vunpack.c.l.b16 %v956
    %v989 = vunpack.c.l.b16 %v957
    %v990 = vunpack.c.l.b16 %v958
    %v991 = vpack.c.b16 %v976, %v975
    %v992 = vpack.c.b16 %v978, %v977
    %v993 = vpack.c.b16 %v980, %v979
    %v994 = vpack.c.b16 %v982, %v981
    %v995 = vpack.c.b16 %v984, %v983
    %v996 = vpack.c.b16 %v986, %v985
    %v997 = vpack.c.b16 %v988, %v987
    %v998 = vpack.c.b16 %v990, %v989
    %v1000 = vsel %vm108, %v991, 0
    %v1003 = vsel %vm108, %v992, 0
    %v1006 = vsel %vm108, %v993, 0
    %v1009 = vsel %vm108, %v994, 0
    %v1012 = vsel %vm108, %v995, 0
    %v1015 = vsel %vm108, %v996, 0
    %v1018 = vsel %vm108, %v997, 0
    %v1021 = vsel %vm108, %v998, 0
    %1023 = vmatprep.subr.bf16.mxu0 0
    %1024 = vmatpush1.bf16.msra.mxu0 %v103
    %1025 = vmatprep.subr.bf16.mxu0 0
    %1026 = vmatpush1.bf16.msra.mxu0 %v104
    %1027 = vmatprep.subr.bf16.mxu0 0
    %1028 = vmatpush1.bf16.msra.mxu0 %v135
    %1029 = vmatprep.subr.bf16.mxu0 0
    %1030 = vmatpush1.bf16.msra.mxu0 0
    %1031 = vmatprep.subr.bf16.mxu0 0
    %1032 = vmatpush1.bf16.msra.mxu0 0
    %1033 = vmatprep.subr.bf16.mxu0 0
    %1034 = vmatpush1.bf16.msra.mxu0 0
    %1035 = vmatprep.subr.bf16.mxu0 0
    %1036 = vmatpush1.bf16.msra.mxu0 0
    %1037 = vmatprep.subr.bf16.mxu0 0
    %1038 = vmatpush1.bf16.msra.mxu0 0
    %1039 = vmatprep.subr.bf16.mxu0 0
    %1040 = vmatpush1.bf16.msra.mxu0 0
    %1041 = vmatprep.subr.bf16.mxu0 0
    %1042 = vmatpush1.bf16.msra.mxu0 0
    %1043 = vmatprep.subr.bf16.mxu0 0
    %1044 = vmatpush1.bf16.msra.mxu0 0
    %1045 = vmatprep.subr.bf16.mxu0 0
    %1046 = vmatpush1.bf16.msra.mxu0 0
    %1047 = vmatprep.subr.bf16.mxu0 0
    %1048 = vmatpush1.bf16.msra.mxu0 0
    %1049 = vmatprep.subr.bf16.mxu0 0
    %1050 = vmatpush1.bf16.msra.mxu0 0
    %1051 = vmatprep.subr.bf16.mxu0 0
    %1052 = vmatpush1.bf16.msra.mxu0 0
    %1053 = vmatprep.subr.bf16.mxu0 0
    %1054 = vmatpush1.bf16.msra.mxu0 0
    %1055 = vmatprep.mubr.bf16.mxu0 0
    %1056 = vmatmul.mubr.bf16.gmra.mrb[0].mxu0 %v1000
    %v1057 = vpop.f32.mrb[0].mxu0
    %v1058 = vadd.f32 %v51, %v1057
    %v1059 = vpop.f32.mrb[0].mxu0
    %v1060 = vpop.f32.mrb[0].mxu0
    %v1061 = vadd.f32 %v51, %v1060
    %v1062 = vpop.f32.mrb[0].mxu0
    %1063 = vmatprep.mubr.bf16.mxu0 0
    %1064 = vmatmul.mubr.bf16.gmra.mrb[0].mxu0 %v1003
    %v1065 = vpop.f32.mrb[0].mxu0
    %v1066 = vadd.f32 %v51, %v1065
    %v1067 = vpop.f32.mrb[0].mxu0
    %v1068 = vpop.f32.mrb[0].mxu0
    %v1069 = vadd.f32 %v51, %v1068
    %v1070 = vpop.f32.mrb[0].mxu0
    %1071 = vmatprep.mubr.bf16.mxu0 0
    %1072 = vmatmul.mubr.bf16.gmra.mrb[0].mxu0 %v1006
    %v1073 = vpop.f32.mrb[0].mxu0
    %v1074 = vadd.f32 %v51, %v1073
    %v1075 = vpop.f32.mrb[0].mxu0
    %v1076 = vpop.f32.mrb[0].mxu0
    %v1077 = vadd.f32 %v51, %v1076
    %v1078 = vpop.f32.mrb[0].mxu0
    %1079 = vmatprep.mubr.bf16.mxu0 0
    %1080 = vmatmul.mubr.bf16.gmra.mrb[0].mxu0 %v1009
    %v1081 = vpop.f32.mrb[0].mxu0
    %v1082 = vadd.f32 %v51, %v1081
    %v1083 = vpop.f32.mrb[0].mxu0
    %v1084 = vpop.f32.mrb[0].mxu0
    %v1085 = vadd.f32 %v51, %v1084
    %v1086 = vpop.f32.mrb[0].mxu0
    %1087 = vmatprep.mubr.bf16.mxu0 0
    %1088 = vmatmul.mubr.bf16.gmra.mrb[0].mxu0 %v1012
    %v1089 = vpop.f32.mrb[0].mxu0
    %v1090 = vadd.f32 %v51, %v1089
    %v1091 = vpop.f32.mrb[0].mxu0
    %v1092 = vpop.f32.mrb[0].mxu0
    %v1093 = vadd.f32 %v51, %v1092
    %v1094 = vpop.f32.mrb[0].mxu0
    %1095 = vmatprep.mubr.bf16.mxu0 0
    %1096 = vmatmul.mubr.bf16.gmra.mrb[0].mxu0 %v1015
    %v1097 = vpop.f32.mrb[0].mxu0
    %v1098 = vadd.f32 %v51, %v1097
    %v1099 = vpop.f32.mrb[0].mxu0
    %v1100 = vpop.f32.mrb[0].mxu0
    %v1101 = vadd.f32 %v51, %v1100
    %v1102 = vpop.f32.mrb[0].mxu0
    %1103 = vmatprep.mubr.bf16.mxu0 0
    %1104 = vmatmul.mubr.bf16.gmra.mrb[0].mxu0 %v1018
    %v1105 = vpop.f32.mrb[0].mxu0
    %v1106 = vadd.f32 %v51, %v1105
    %v1107 = vpop.f32.mrb[0].mxu0
    %v1108 = vpop.f32.mrb[0].mxu0
    %v1109 = vadd.f32 %v51, %v1108
    %v1110 = vpop.f32.mrb[0].mxu0
    %1111 = vmatprep.mubr.bf16.mxu0 0
    %1112 = vmatmul.mubr.bf16.gmra.mrb[0].mxu0 %v1021
    %v1113 = vpop.f32.mrb[0].mxu0
    %v1114 = vadd.f32 %v51, %v1113
    %v1115 = vpop.f32.mrb[0].mxu0
    %v1116 = vpop.f32.mrb[0].mxu0
    %v1117 = vadd.f32 %v51, %v1116
    %v1118 = vpop.f32.mrb[0].mxu0
    %1119 = vdwg.mxu0
    %v1120 = vmax.f32 %v1058, 0.0
    %v1121 = vmax.f32 %v1061, 0.0
    %v1122 = vmax.f32 %v1066, 0.0
    %v1123 = vmax.f32 %v1069, 0.0
    %v1124 = vmax.f32 %v1074, 0.0
    %v1125 = vmax.f32 %v1077, 0.0
    %v1126 = vmax.f32 %v1082, 0.0
    %v1127 = vmax.f32 %v1085, 0.0
    %v1128 = vmax.f32 %v1090, 0.0
    %v1129 = vmax.f32 %v1093, 0.0
    %v1130 = vmax.f32 %v1098, 0.0
    %v1131 = vmax.f32 %v1101, 0.0
    %v1132 = vmax.f32 %v1106, 0.0
    %v1133 = vmax.f32 %v1109, 0.0
    %v1134 = vmax.f32 %v1114, 0.0
    %v1135 = vmax.f32 %v1117, 0.0
    %v1136 = vmul.f32 %v1120, %v596
    %v1137 = vmul.f32 %v1121, %v601
    %v1138 = vmul.f32 %v1122, %v606
    %v1139 = vmul.f32 %v1123, %v611
    %v1140 = vmul.f32 %v1124, %v616
    %v1141 = vmul.f32 %v1125, %v621
    %v1142 = vmul.f32 %v1126, %v626
    %v1143 = vmul.f32 %v1127, %v631
    %v1144 = vmul.f32 %v1128, %v636
    %v1145 = vmul.f32 %v1129, %v641
    %v1146 = vmul.f32 %v1130, %v646
    %v1147 = vmul.f32 %v1131, %v651
    %v1148 = vmul.f32 %v1132, %v656
    %v1149 = vmul.f32 %v1133, %v661
    %v1150 = vmul.f32 %v1134, %v666
    %v1151 = vmul.f32 %v1135, %v671
    %v1152 = vadd.f32 %v1136, %v1137
    %v1153 = vadd.f32 %v1152, %v1138
    %v1154 = vadd.f32 %v1153, %v1139
    %v1155 = vadd.f32 %v1154, %v1140
    %v1156 = vadd.f32 %v1155, %v1141
    %v1157 = vadd.f32 %v1156, %v1142
    %v1158 = vadd.f32 %v1157, %v1143
    %v1159 = vadd.f32 %v1158, %v1144
    %v1160 = vadd.f32 %v1159, %v1145
    %v1161 = vadd.f32 %v1160, %v1146
    %v1162 = vadd.f32 %v1161, %v1147
    %v1163 = vadd.f32 %v1162, %v1148
    %v1164 = vadd.f32 %v1163, %v1149
    %v1165 = vadd.f32 %v1164, %v1150
    %v1166 = vadd.f32 %v1165, %v1151
    %v1167 = vrot.slane %v1166, 4
    %v1168 = vadd.f32 %v1166, %v1167
    %v1169 = vrot.slane %v1168, 2
    %v1170 = vadd.f32 %v1168, %v1169
    %v1171 = vrot.slane %v1170, 1
    %v1172 = vadd.f32 %v1170, %v1171
    %v1173 = vadd.f32 %v942, %v1172
    %vm1174 = vcmask 1040384
    %v1175 = vsel %vm1174, %v710, %v1173
    %v1176 = vld [vmem:[%s4] sm:$0xff]
    %v1177 = vld [vmem:[%s4 + $0x8] sm:$0xff]
    %v1178 = vld [vmem:[%s4 + $0x10] sm:$0xff]
    %v1179 = vld [vmem:[%s4 + $0x18] sm:$0xff]
    %v1180 = vld [vmem:[%s4 + $0x20] sm:$0xff]
    %v1181 = vld [vmem:[%s4 + $0x28] sm:$0xff]
    %v1182 = vld [vmem:[%s4 + $0x30] sm:$0xff]
    %v1183 = vld [vmem:[%s4 + $0x38] sm:$0xff]
    %v1184 = vld [vmem:[%s4 + $0x40] sm:$0xff]
    %v1185 = vld [vmem:[%s4 + $0x48] sm:$0xff]
    %v1186 = vld [vmem:[%s4 + $0x50] sm:$0xff]
    %v1187 = vld [vmem:[%s4 + $0x58] sm:$0xff]
    %v1188 = vld [vmem:[%s4 + $0x60] sm:$0xff]
    %v1189 = vld [vmem:[%s4 + $0x68] sm:$0xff]
    %v1190 = vld [vmem:[%s4 + $0x70] sm:$0xff]
    %v1191 = vld [vmem:[%s4 + $0x78] sm:$0xff]
    %v1192 = vld [vmem:[%s5] sm:$0x1]
    %v1194 = vlaneseq
    %v1195 = vshrl.u32 %v1194, 7
    %v1196 = vsub.s32 0, %v1195
    %v1197 = vrot.slane %v1192, %v1196
    %1199 = vmatprep.subr.mxu0 0.0
    %1200 = vmatpush1.msra.mxu0 %v1176
    %1201 = vmatprep.subr.mxu0 0.0
    %1202 = vmatpush1.msra.mxu0 %v1177
    %1203 = vmatprep.subr.mxu0 0.0
    %1204 = vmatpush1.msra.mxu0 %v1178
    %1205 = vmatprep.subr.mxu0 0.0
    %1206 = vmatpush1.msra.mxu0 %v1179
    %1207 = vmatprep.subr.mxu0 0.0
    %1208 = vmatpush1.msra.mxu0 %v1180
    %1209 = vmatprep.subr.mxu0 0.0
    %1210 = vmatpush1.msra.mxu0 %v1181
    %1211 = vmatprep.subr.mxu0 0.0
    %1212 = vmatpush1.msra.mxu0 %v1182
    %1213 = vmatprep.subr.mxu0 0.0
    %1214 = vmatpush1.msra.mxu0 %v1183
    %1215 = vmatprep.subr.mxu0 0.0
    %1216 = vmatpush1.msra.mxu0 %v1184
    %1217 = vmatprep.subr.mxu0 0.0
    %1218 = vmatpush1.msra.mxu0 %v1185
    %1219 = vmatprep.subr.mxu0 0.0
    %1220 = vmatpush1.msra.mxu0 %v1186
    %1221 = vmatprep.subr.mxu0 0.0
    %1222 = vmatpush1.msra.mxu0 %v1187
    %1223 = vmatprep.subr.mxu0 0.0
    %1224 = vmatpush1.msra.mxu0 %v1188
    %1225 = vmatprep.subr.mxu0 0.0
    %1226 = vmatpush1.msra.mxu0 %v1189
    %1227 = vmatprep.subr.mxu0 0.0
    %1228 = vmatpush1.msra.mxu0 %v1190
    %1229 = vmatprep.subr.mxu0 0.0
    %1230 = vmatpush1.msra.mxu0 %v1191
    %1231 = vmatprep.subr.mxu0 0.0
    %1232 = vmatpush1.msra.mxu0 0.0
    %1233 = vmatprep.subr.mxu0 0.0
    %1234 = vmatpush1.msra.mxu0 0.0
    %1235 = vmatprep.subr.mxu0 0.0
    %1236 = vmatpush1.msra.mxu0 0.0
    %1237 = vmatprep.subr.mxu0 0.0
    %1238 = vmatpush1.msra.mxu0 0.0
    %1239 = vmatprep.subr.mxu0 0.0
    %1240 = vmatpush1.msra.mxu0 0.0
    %1241 = vmatprep.subr.mxu0 0.0
    %1242 = vmatpush1.msra.mxu0 0.0
    %1243 = vmatprep.subr.mxu0 0.0
    %1244 = vmatpush1.msra.mxu0 0.0
    %1245 = vmatprep.subr.mxu0 0.0
    %1246 = vmatpush1.msra.mxu0 0.0
    %1247 = vmatprep.subr.mxu0 0.0
    %1248 = vmatpush1.msra.mxu0 0.0
    %1249 = vmatprep.subr.mxu0 0.0
    %1250 = vmatpush1.msra.mxu0 0.0
    %1251 = vmatprep.subr.mxu0 0.0
    %1252 = vmatpush1.msra.mxu0 0.0
    %1253 = vmatprep.subr.mxu0 0.0
    %1254 = vmatpush1.msra.mxu0 0.0
    %1255 = vmatprep.subr.mxu0 0.0
    %1256 = vmatpush1.msra.mxu0 0.0
    %1257 = vmatprep.subr.mxu0 0.0
    %1258 = vmatpush1.msra.mxu0 0.0
    %1259 = vmatprep.subr.mxu0 0.0
    %1260 = vmatpush1.msra.mxu0 0.0
    %1261 = vmatprep.subr.mxu0 0.0
    %1262 = vmatpush1.msra.mxu0 0.0
    %1263 = vmatprep.mubr.f32.mxu0 0.0
    %1264 = vmatmul.mubr.f32.gmra.mrb[0].mxu0 %v1175
    %v1265 = vpop.f32.mrb[0].mxu0
    %v1266 = vadd.f32 %v1197, %v1265
    %v1267 = vpop.f32.mrb[0].mxu0
    %1268 = vdwg.mxu0
    %1269 = vst [vmem:[#allocation2] sm:$0x3] %v1266
    // Predicated region
    $region26: #{tpu_custom_call.1} parent=1 // pred_check
      _
    $region27: #{tpu_custom_call.1} parent=1 // pred_check_branch
      %1271 = sbr.rel (0) target = $region29
    $region28: #{tpu_custom_call.1} parent=1 // pred_region
      %s1273 = ssub.s32 32, 32
      %1274 = vsyncadd [#allocation3], %s1273
      %s1276 = sshll.u32 [#allocation2], 4
      %s1277 = int_to_ptr.vmem [resolvable:$true] %s1276
      %1279 = dma.vmem_to_hbm [thread:$0]  %s1277, 32, %s6, [#allocation3]
    $region29: #{tpu_custom_call.1} parent=1 // pred_fallthru
      _
    // Predicated region
    $region30: #{tpu_custom_call.1} parent=1 // pred_check
      _
    $region31: #{tpu_custom_call.1} parent=1 // pred_check_branch
      %1281 = sbr.rel (0) target = $region33
    $region32: #{tpu_custom_call.1} parent=1 // pred_region
      %1282 = dma.done [#allocation3], 32
    $region33: #{tpu_custom_call.1} parent=1 // pred_fallthru
      _
    %1283 = vsyncpa [#allocation3], 1

</llo_original>
